<compile_context>
chip_gen: v5e
topology: v5e:2x2
jax: 0.10.0
libtpu: 0.0.40
codegen_flags: <defaults>
</compile_context>

<pallas_src>
import functools

import numpy as np
import jax
import jax.numpy as jnp
from jax.experimental import pallas as pl
from jax.experimental.pallas import tpu as pltpu

_LOG_CLAMP = -100.0   # matches torch F.binary_cross_entropy log clamp
_CORE_SPLITS = 2      # leading parallel grid axis (v7x has 2 TensorCores/chip)


def _round_up(x, m):
    return -(-x // m) * m


def _pick_lane_tile(n_min, rows, r_acc, itemsize, vmem_budget_bytes=8 << 20):
    """Lane tile: multiple of 128, capped at 2048 (compute-bound kernel, 512-1k
    lanes already near pipeline ceiling), clamped to the smallest scale's
    rounded size so small scales aren't padded to the big scale's tile."""
    bytes_per_lane = 2 * rows * itemsize + (rows + 2 * r_acc) * 4
    cap = max(128, (vmem_budget_bytes // bytes_per_lane) // 128 * 128)
    return int(min(2048, cap, _round_up(n_min, 128)))


def _yolo_acc_kernel(aid_ref, slab_ref, o_ref, *, t_half, check, soft_labels):
    """Accumulate lane-pre-reduced masked partial sums for one lane tile.

    slab_ref : (16 + 2*Cp, TN) attribute-major slab
        rows  0..3   x, y, w, h        row 4   conf
        rows  5..6   fg, bg masks      row 7   zero pad
        rows  8..11  tx, ty, tw, th    row 12  tconf    rows 13..15 zero pad
        rows 16..16+Cp-1        class probs   (zero padded to Cp)
        rows 16+Cp..16+2*Cp-1   class targets (zero padded to Cp)
    o_ref    : (16 + Cp, 128) accumulator for this (core, scale) block
        rows 0..3 fg*(xywh-txywh)^2 ; row 4 fg*bce(conf) ; row 5 bg*bce(conf)
        row 6 fg count ; row 7 bg count ; rows 8..9 xy range-violation counts
        rows 10..15 unused (zero) ; rows 16.. fg*bce(cls) per class
    """
    cp = o_ref.shape[0] - 16
    tn = slab_ref.shape[1]
    n_grp = tn // 128

    cc = pl.program_id(0)
    t = pl.program_id(1)
    idx = cc * t_half + t
    prev = jnp.maximum(idx - 1, 0)
    # First tile of this core's (core, scale) accumulator block: reset it.
    first = jnp.logical_or(t == 0, aid_ref[idx] != aid_ref[prev])

    @pl.when(first)
    def _():
        o_ref[...] = jnp.zeros_like(o_ref)

    def lanesum(v):  # (r, TN) -> (r, 128): vreg-column adds, pure VALU
        acc = v[:, 0:128]
        for j in range(1, n_grp):
            acc = acc + v[:, j * 128:(j + 1) * 128]
        return acc

    f32 = jnp.float32
    # Per-slice reads (no full-slab f32 materialization).
    box = slab_ref[0:4, :].astype(f32)
    conf = slab_ref[4:5, :].astype(f32)
    fg = slab_ref[5:6, :].astype(f32)
    bg = slab_ref[6:7, :].astype(f32)
    tbox = slab_ref[8:12, :].astype(f32)
    tconf = slab_ref[12:13, :].astype(f32)
    cls_p = slab_ref[16:16 + cp, :].astype(f32)
    cls_t = slab_ref[16 + cp:16 + 2 * cp, :].astype(f32)

    def clog(p):  # PyTorch-style clamped log keeps masked-out lanes finite.
        return jnp.maximum(jnp.log(p), _LOG_CLAMP)

    if soft_labels:
        # Exact for soft labels; 2x the transcendental count.
        bce_conf = -(tconf * clog(conf) + (1.0 - tconf) * clog(1.0 - conf))
        bce_cls = -(cls_t * clog(cls_p) + (1.0 - cls_t) * clog(1.0 - cls_p))
    else:
        # Exact for strictly {0,1} targets (YOLOv3 tconf / one-hot tcls).
        bce_conf = -clog(jnp.where(tconf > 0.5, conf, 1.0 - conf))
        bce_cls = -clog(jnp.where(cls_t > 0.5, cls_p, 1.0 - cls_p))

    o_ref[0:4, :] += lanesum(fg * (box - tbox) ** 2)
    o_ref[4:5, :] += lanesum(fg * bce_conf)
    o_ref[5:6, :] += lanesum(bg * bce_conf)
    o_ref[6:7, :] += lanesum(fg)
    o_ref[7:8, :] += lanesum(bg)
    if check:
        xy = box[0:2, :]
        o_ref[8:10, :] += lanesum(
            jnp.logical_or(xy < 0.0, xy > 1.0).astype(f32))
    o_ref[16:16 + cp, :] += lanesum(fg * bce_cls)


def _pack_scale_slab(det, scale_targets, n_cls, cp, tn, dtype):
    """Build the attribute-major (16 + 2*Cp, N_pad) slab for one scale."""
    fg, bg, tx, ty, tw, th, tcls, tconf = scale_targets
    d = det.shape[-1]
    n = int(np.prod(det.shape[:-1]))
    det_t = det.reshape(n, d).T.astype(dtype)            # (5 + C, N)
    z1 = jnp.zeros((1, n), dtype)
    zc = jnp.zeros((max(cp - n_cls, 0), n), dtype)
    tb = jnp.stack([tx.reshape(n), ty.reshape(n),
                    tw.reshape(n), th.reshape(n)], axis=0).astype(dtype)
    pieces = [det_t[0:5],
              fg.reshape(1, n).astype(dtype),
              bg.reshape(1, n).astype(dtype),
              z1,
              tb,
              tconf.reshape(1, n).astype(dtype),
              jnp.zeros((3, n), dtype),
              det_t[5:5 + n_cls], zc,
              tcls.reshape(n, n_cls).T.astype(dtype), zc]
    slab = jnp.concatenate(pieces, axis=0)                # (16 + 2*Cp, N)
    n_pad = _round_up(n, tn)
    if n_pad != n:  # zero-padded lanes have fg = bg = 0 -> contribute nothing
        slab = jnp.pad(slab, ((0, 0), (0, n_pad - n)))
    return slab


@functools.partial(jax.jit, static_argnames=("reduction", "slab_dtype",
                                              "check", "soft_labels"))
def _yolo_v3_loss_fused(dets, per_scale_targets, weights, *, reduction,
                        slab_dtype, check, soft_labels):
    dtype = {"float32": jnp.float32, "bfloat16": jnp.bfloat16}[slab_dtype]
    itemsize = jnp.dtype(dtype).itemsize
    num_scales = len(dets)
    n_cls = dets[0].shape[-1] - 5
    cp = _round_up(max(n_cls, 1), 8)      # classes padded to 8-sublane tile
    rows = 16 + 2 * cp                    # input slab rows
    r_acc = 16 + cp                       # accumulator rows (128 lanes wide)

    n_list = [int(np.prod(d.shape[:-1])) for d in dets]
    tn = _pick_lane_tile(min(n_list), rows, r_acc, itemsize)

    slabs = [_pack_scale_slab(d, t, n_cls, cp, tn, dtype)
             for d, t in zip(dets, per_scale_targets)]
    tiles = [s.shape[1] // tn for s in slabs]
    total_tiles = sum(tiles)
    t_half = -(-total_tiles // _CORE_SPLITS)
    padded_tiles = _CORE_SPLITS * t_half

    # Static tile -> scale table, padded tiles inherit the last scale's id
    # (their lanes are all-zero so they contribute nothing).
    sid = []
    for i, nt in enumerate(tiles):
        sid.extend([i] * nt)
    sid.extend([num_scales - 1] * (padded_tiles - total_tiles))
    # Accumulator-block id per tile = core * num_scales + scale.
    aid = np.array([(i // t_half) * num_scales + sid[i]
                    for i in range(padded_tiles)], np.int32)
    # Statically known visited (core, scale) blocks -> avoid summing
    # never-written (uninitialized) output blocks in the epilogue.
    visited = {}
    for i, s in enumerate(sid):
        visited.setdefault(s, set()).add(i // t_half)

    slab_all = jnp.concatenate(slabs, axis=1)
    lane_pad = (padded_tiles - total_tiles) * tn
    if lane_pad:
        slab_all = jnp.pad(slab_all, ((0, 0), (0, lane_pad)))

    # Explicit VMEM budget: double-buffered input slab + double-buffered
    # accumulator + in-flight f32 temporaries (slices, bce_cls, products).
    footprint = (2 * rows * tn * itemsize + 4 * r_acc * 128 * 4
                 + (rows + 3 * cp + 24) * tn * 4)
    vmem_limit = int(min(48 << 20, max(16 << 20, 2 * footprint)))

    kernel = functools.partial(_yolo_acc_kernel, t_half=t_half,
                               check=check, soft_labels=soft_labels)

    out = pl.pallas_call(
        kernel,
        out_shape=jax.ShapeDtypeStruct(
            (_CORE_SPLITS * num_scales * r_acc, 128), jnp.float32),
        grid_spec=pltpu.PrefetchScalarGridSpec(
            num_scalar_prefetch=1,
            grid=(_CORE_SPLITS, t_half),
            in_specs=[pl.BlockSpec(
                (rows, tn), lambda cc, t, aid_ref: (0, cc * t_half + t))],
            out_specs=pl.BlockSpec(
                (r_acc, 128),
                lambda cc, t, aid_ref: (aid_ref[cc * t_half + t], 0)),
        ),
        compiler_params=pltpu.CompilerParams(
            dimension_semantics=("parallel", "arbitrary"),
            vmem_limit_bytes=vmem_limit),
    )(jnp.asarray(aid), slab_all)

    # Tiny epilogue: sum each scale's visited (core, scale) blocks, then one
    # 128-lane reduce per scale; scalar weighting fused by XLA.
    blocks = out.reshape(_CORE_SPLITS * num_scales, r_acc, 128)
    scale_sums = []
    for s in range(num_scales):
        parts = [blocks[cc * num_scales + s] for cc in sorted(visited[s])]
        blk = parts[0]
        for p in parts[1:]:
            blk = blk + p
        scale_sums.append(blk.sum(axis=-1))
    sums = jnp.stack(scale_sums, axis=0)          # (num_scales, r_acc)

    sum_loc = sums[:, 0:4].sum(-1)
    sum_cfg, sum_cbg = sums[:, 4], sums[:, 5]
    n_fg, n_bg = sums[:, 6], sums[:, 7]
    sum_cls = sums[:, 16:].sum(-1)

    w_fg, w_bg, w_cls, w_conf, w_loc = (weights[i] for i in range(5))
    if reduction == "mean":
        # NOTE: like PyTorch, a scale with an empty fg/bg mask yields NaN here.
        loss_loc = sum_loc / n_fg
        loss_fg = sum_cfg / n_fg
        loss_bg = sum_cbg / n_bg
        loss_cls = sum_cls / (n_fg * n_cls)
    else:  # 'sum'
        loss_loc, loss_fg, loss_bg, loss_cls = sum_loc, sum_cfg, sum_cbg, sum_cls

    loss_conf = w_bg * loss_bg + w_fg * loss_fg
    per_scale = w_loc * loss_loc + w_conf * loss_conf + w_cls * loss_cls
    total = per_scale.sum()

    if check:
        xy_ok = sums[:, 8:10].sum() == 0.0
    else:
        xy_ok = jnp.array(True)
    return total, xy_ok


class YoloV3Loss:
    """JAX / Pallas port of vortex YoloV3Loss (reduction='mean' or 'sum').

    TODO(synk): build_targets is not in the provided source; forward() takes
    per-scale pre-built targets (fg, bg, tx, ty, tw, th, tcls, tconf).
    """

    def __init__(self, weight_fg, weight_bg, ignore_thresh,
                 weight_loc=1.0, weight_classes=1.0, weight_conf=1.0,
                 reduction="mean", check=True, slab_dtype="float32",
                 soft_labels=False):
        if reduction not in ("mean", "sum"):
            raise ValueError("only 'mean'/'sum' reductions are supported")
        self.weights = jnp.array(
            [weight_fg, weight_bg, weight_classes, weight_conf, weight_loc],
            jnp.float32)
        self.ignore_thresh = float(ignore_thresh)   # only used by build_targets
        self.reduction = reduction
        self.check = bool(check)
        # slab_dtype="bfloat16" halves HBM packing traffic (kernel math stays
        # f32) -- useful on v5e; keep "float32" for parity with the reference.
        self.slab_dtype = slab_dtype
        # soft_labels=True falls back to two-term BCE (needed only if targets
        # can be non-binary); default uses the cheaper single-log form.
        self.soft_labels = bool(soft_labels)
        self.anchors = None

    def assign_anchors(self, anchors):
        self.anchors = jnp.stack([jnp.asarray(a) for a in anchors])

    def forward(self, inputs, per_scale_targets):
        if self.anchors is None:
            raise RuntimeError("please assign anchors before computing loss")
        total, xy_ok = _yolo_v3_loss_fused(
            tuple(inputs), tuple(tuple(t) for t in per_scale_targets),
            self.weights, reduction=self.reduction, slab_dtype=self.slab_dtype,
            check=self.check, soft_labels=self.soft_labels)
        if self.check:
            # One host sync per forward; set check=False in training loops.
            if not bool(xy_ok):
                raise RuntimeError("YOLO Loss assume xy center is [0.,1.]")
        return total

    __call__ = forward


# ---------------- reference (pure numpy, mimics the PyTorch code) ------------
def _np_bce(p, t, reduction):
    lp = np.maximum(np.log(p), _LOG_CLAMP)
    l1p = np.maximum(np.log(1.0 - p), _LOG_CLAMP)
    v = -(t * lp + (1.0 - t) * l1p)
    return v.mean() if reduction == "mean" else v.sum()


def _np_mse(a, b, reduction):
    v = (a - b) ** 2
    return v.mean() if reduction == "mean" else v.sum()


def ref_scale_loss(det, tgt_tuple, wfg, wbg, wloc, wcls, wconf, reduction):
    fg, bg, tx, ty, tw, th, tcls, tconf = [np.asarray(a) for a in tgt_tuple]
    det = np.asarray(det, np.float32)
    fg = fg.astype(bool)
    bg = bg.astype(bool)
    x, y, w, h = det[..., 0], det[..., 1], det[..., 2], det[..., 3]
    conf, cls = det[..., 4], det[..., 5:]
    loss_loc = (_np_mse(x[fg], tx[fg], reduction) + _np_mse(y[fg], ty[fg], reduction)
                + _np_mse(w[fg], tw[fg], reduction) + _np_mse(h[fg], th[fg], reduction))
    loss_conf = (wbg * _np_bce(conf[bg], tconf[bg], reduction)
                 + wfg * _np_bce(conf[fg], tconf[fg], reduction))
    loss_cls = _np_bce(cls[fg], tcls[fg], reduction)
    return wloc * loss_loc + wconf * loss_conf + wcls * loss_cls


# ------------------------------- demo ----------------------------------------
if __name__ == "__main__":
    B, A, C = 2, 3, 3          # batch, anchors per scale, classes
    GRIDS = (4, 8, 16)         # three YOLO scales
    D = 5 + C

    anchors = tuple(
        jnp.array([[1.0 + s, 2.0 + s], [3.0 + s, 4.0 + s], [5.0 + s, 6.0 + s]],
                  jnp.float32) for s in range(3))

    key = jax.random.PRNGKey(0)
    dets, targets = [], []
    for g in GRIDS:
        key, k1, k2, k3, k4, k5, k6, k7 = jax.random.split(key, 8)
        raw = jax.random.normal(k1, (B, A, g, g, D), jnp.float32)
        det = jnp.concatenate(
            [jax.nn.sigmoid(raw[..., 0:2]),   # x, y in [0, 1]
             raw[..., 2:4],                   # w, h (raw regression)
             jax.nn.sigmoid(raw[..., 4:])],   # conf + classes in [0, 1]
            axis=-1)

        fg = jax.random.uniform(k2, (B, A, g, g)) < 0.15
        fg = fg.at[0, 0, 0, 0].set(True)      # guarantee non-empty fg set
        bg = jnp.logical_and(jax.random.uniform(k3, (B, A, g, g)) < 0.7,
                             jnp.logical_not(fg))
        bg = bg.at[0, 0, 0, 1].set(True)      # guarantee non-empty bg set

        tx = jax.random.uniform(k4, (B, A, g, g))
        ty = jax.random.uniform(k5, (B, A, g, g))
        twh = jax.random.normal(k6, (B, A, g, g, 2))
        tconf = fg.astype(jnp.float32)
        tcls = (jax.random.uniform(k7, (B, A, g, g, C)) < 0.3).astype(jnp.float32)

        dets.append(det)
        targets.append((fg, bg, tx, ty, twh[..., 0], twh[..., 1], tcls, tconf))

    for reduction, rtol, atol in (("mean", 2e-4, 1e-3), ("sum", 2e-4, 1e-2)):
        loss_mod = YoloV3Loss(weight_fg=1.0, weight_bg=100.0, ignore_thresh=0.5,
                              reduction=reduction)
        loss_mod.assign_anchors(anchors)
        total = loss_mod(dets, targets)
        total = jax.block_until_ready(total)

        ref_total = sum(
            ref_scale_loss(d, t, 1.0, 100.0, 1.0, 1.0, 1.0, reduction)
            for d, t in zip(dets, targets))
        np.testing.assert_allclose(np.asarray(total), ref_total,
                                   rtol=rtol, atol=atol)

    print("KERNEL_OK")
</pallas_src>

<mosaic_0001>
module attributes {stable_mosaic.version = 11 : i64} {
  func.func @_yolo_acc_kernel(%arg0: i32, %arg1: i32, %arg2: memref<16xi32, #tpu.memory_space<smem>>, %arg3: memref<32x128xf32, #tpu.memory_space<vmem>>, %arg4: memref<24x128xf32, #tpu.memory_space<vmem>>) attributes {dimension_semantics = [#tpu.dimension_semantics<parallel>, #tpu.dimension_semantics<arbitrary>], iteration_bounds = array<i64: 2, 8>, scalar_prefetch = 1 : i64, scratch_operands = 0 : i64, tpu.core_type = #tpu.core_type<tc>, window_params = [{transform_indices = @transform_0, window_bounds = array<i64: 32, 128>}, {transform_indices = @transform_1, window_bounds = array<i64: 24, 128>}]} {
    %c8_i32 = arith.constant 8 : i32
    %0 = arith.muli %arg0, %c8_i32 : i32
    %1 = arith.addi %0, %arg1 : i32
    %c1_i32 = arith.constant 1 : i32
    %2 = arith.subi %1, %c1_i32 : i32
    %c0_i32 = arith.constant 0 : i32
    %3 = arith.maxsi %2, %c0_i32 : i32
    %c0_i32_0 = arith.constant 0 : i32
    %4 = arith.cmpi eq, %arg1, %c0_i32_0 : i32
    %5 = arith.index_cast %1 : i32 to index
    %6 = memref.load %arg2[%5] : memref<16xi32, #tpu.memory_space<smem>>
    %7 = arith.index_cast %3 : i32 to index
    %8 = memref.load %arg2[%7] : memref<16xi32, #tpu.memory_space<smem>>
    %9 = arith.cmpi ne, %6, %8 : i32
    %10 = arith.ori %4, %9 : i1
    %11 = arith.extui %10 : i1 to i32
    %c0_i32_1 = arith.constant 0 : i32
    %12 = arith.cmpi ne, %11, %c0_i32_1 : i32
    scf.if %12 {
      %cst_46 = arith.constant 0.000000e+00 : f32
      %78 = vector.broadcast %cst_46 : f32 to vector<24x128xf32>
      %c0_47 = arith.constant 0 : index
      %c0_48 = arith.constant 0 : index
      %79 = vector.load %arg4[%c0_47, %c0_48] : memref<24x128xf32, #tpu.memory_space<vmem>>, vector<24x128xf32>
      tpu.vector_store %arg4[%c0_47, %c0_48], %78 {strides = array<i32>} : memref<24x128xf32, #tpu.memory_space<vmem>>, vector<24x128xf32>,
    } else {
    }
    %c0 = arith.constant 0 : index
    %c0_2 = arith.constant 0 : index
    %13 = vector.load %arg3[%c0, %c0_2] : memref<32x128xf32, #tpu.memory_space<vmem>>, vector<4x128xf32>
    %c4 = arith.constant 4 : index
    %c0_3 = arith.constant 0 : index
    %14 = vector.load %arg3[%c4, %c0_3] : memref<32x128xf32, #tpu.memory_space<vmem>>, vector<1x128xf32>
    %c5 = arith.constant 5 : index
    %c0_4 = arith.constant 0 : index
    %15 = vector.load %arg3[%c5, %c0_4] : memref<32x128xf32, #tpu.memory_space<vmem>>, vector<1x128xf32>
    %c6 = arith.constant 6 : index
    %c0_5 = arith.constant 0 : index
    %16 = vector.load %arg3[%c6, %c0_5] : memref<32x128xf32, #tpu.memory_space<vmem>>, vector<1x128xf32>
    %c8 = arith.constant 8 : index
    %c0_6 = arith.constant 0 : index
    %17 = vector.load %arg3[%c8, %c0_6] : memref<32x128xf32, #tpu.memory_space<vmem>>, vector<4x128xf32>
    %c12 = arith.constant 12 : index
    %c0_7 = arith.constant 0 : index
    %18 = vector.load %arg3[%c12, %c0_7] : memref<32x128xf32, #tpu.memory_space<vmem>>, vector<1x128xf32>
    %c16 = arith.constant 16 : index
    %c0_8 = arith.constant 0 : index
    %19 = vector.load %arg3[%c16, %c0_8] : memref<32x128xf32, #tpu.memory_space<vmem>>, vector<8x128xf32>
    %c24 = arith.constant 24 : index
    %c0_9 = arith.constant 0 : index
    %20 = vector.load %arg3[%c24, %c0_9] : memref<32x128xf32, #tpu.memory_space<vmem>>, vector<8x128xf32>
    %cst = arith.constant 5.000000e-01 : f32
    %21 = vector.broadcast %cst : f32 to vector<1x128xf32>
    %22 = arith.cmpf ogt, %18, %21 : vector<1x128xf32>
    %cst_10 = arith.constant 1.000000e+00 : f32
    %23 = vector.broadcast %cst_10 : f32 to vector<1x128xf32>
    %24 = arith.subf %23, %14 : vector<1x128xf32>
    %25 = arith.select %22, %14, %24 : vector<1x128xi1>, vector<1x128xf32>
    %26 = math.log %25 : vector<1x128xf32>
    %cst_11 = arith.constant -1.000000e+02 : f32
    %27 = vector.broadcast %cst_11 : f32 to vector<1x128xf32>
    %28 = arith.maximumf %26, %27 : vector<1x128xf32>
    %cst_12 = arith.constant 0.000000e+00 : f32
    %29 = vector.broadcast %cst_12 : f32 to vector<1x128xf32>
    %30 = arith.subf %29, %28 : vector<1x128xf32>
    %cst_13 = arith.constant 5.000000e-01 : f32
    %31 = vector.broadcast %cst_13 : f32 to vector<8x128xf32>
    %32 = arith.cmpf ogt, %20, %31 : vector<8x128xf32>
    %cst_14 = arith.constant 1.000000e+00 : f32
    %33 = vector.broadcast %cst_14 : f32 to vector<8x128xf32>
    %34 = arith.subf %33, %19 : vector<8x128xf32>
    %35 = arith.select %32, %19, %34 : vector<8x128xi1>, vector<8x128xf32>
    %36 = math.log %35 : vector<8x128xf32>
    %cst_15 = arith.constant -1.000000e+02 : f32
    %37 = vector.broadcast %cst_15 : f32 to vector<8x128xf32>
    %38 = arith.maximumf %36, %37 : vector<8x128xf32>
    %cst_16 = arith.constant 0.000000e+00 : f32
    %39 = vector.broadcast %cst_16 : f32 to vector<8x128xf32>
    %40 = arith.subf %39, %38 : vector<8x128xf32>
    %c0_17 = arith.constant 0 : index
    %c0_18 = arith.constant 0 : index
    %41 = vector.load %arg4[%c0_17, %c0_18] : memref<24x128xf32, #tpu.memory_space<vmem>>, vector<4x128xf32>
    %42 = arith.subf %13, %17 : vector<4x128xf32>
    %43 = arith.mulf %42, %42 : vector<4x128xf32>
    %44 = vector.broadcast %15 : vector<1x128xf32> to vector<4x128xf32>
    %45 = arith.mulf %44, %43 : vector<4x128xf32>
    %46 = arith.addf %41, %45 : vector<4x128xf32>
    %c0_19 = arith.constant 0 : index
    %c0_20 = arith.constant 0 : index
    %47 = vector.load %arg4[%c0_19, %c0_20] : memref<24x128xf32, #tpu.memory_space<vmem>>, vector<4x128xf32>
    tpu.vector_store %arg4[%c0_19, %c0_20], %46 {strides = array<i32>} : memref<24x128xf32, #tpu.memory_space<vmem>>, vector<4x128xf32>,
    %c4_21 = arith.constant 4 : index
    %c0_22 = arith.constant 0 : index
    %48 = vector.load %arg4[%c4_21, %c0_22] : memref<24x128xf32, #tpu.memory_space<vmem>>, vector<1x128xf32>
    %49 = arith.mulf %15, %30 : vector<1x128xf32>
    %50 = arith.addf %48, %49 : vector<1x128xf32>
    %c4_23 = arith.constant 4 : index
    %c0_24 = arith.constant 0 : index
    %51 = vector.load %arg4[%c4_23, %c0_24] : memref<24x128xf32, #tpu.memory_space<vmem>>, vector<1x128xf32>
    tpu.vector_store %arg4[%c4_23, %c0_24], %50 {strides = array<i32>} : memref<24x128xf32, #tpu.memory_space<vmem>>, vector<1x128xf32>,
    %c5_25 = arith.constant 5 : index
    %c0_26 = arith.constant 0 : index
    %52 = vector.load %arg4[%c5_25, %c0_26] : memref<24x128xf32, #tpu.memory_space<vmem>>, vector<1x128xf32>
    %53 = arith.mulf %16, %30 : vector<1x128xf32>
    %54 = arith.addf %52, %53 : vector<1x128xf32>
    %c5_27 = arith.constant 5 : index
    %c0_28 = arith.constant 0 : index
    %55 = vector.load %arg4[%c5_27, %c0_28] : memref<24x128xf32, #tpu.memory_space<vmem>>, vector<1x128xf32>
    tpu.vector_store %arg4[%c5_27, %c0_28], %54 {strides = array<i32>} : memref<24x128xf32, #tpu.memory_space<vmem>>, vector<1x128xf32>,
    %c6_29 = arith.constant 6 : index
    %c0_30 = arith.constant 0 : index
    %56 = vector.load %arg4[%c6_29, %c0_30] : memref<24x128xf32, #tpu.memory_space<vmem>>, vector<1x128xf32>
    %57 = arith.addf %56, %15 : vector<1x128xf32>
    %c6_31 = arith.constant 6 : index
    %c0_32 = arith.constant 0 : index
    %58 = vector.load %arg4[%c6_31, %c0_32] : memref<24x128xf32, #tpu.memory_space<vmem>>, vector<1x128xf32>
    tpu.vector_store %arg4[%c6_31, %c0_32], %57 {strides = array<i32>} : memref<24x128xf32, #tpu.memory_space<vmem>>, vector<1x128xf32>,
    %c7 = arith.constant 7 : index
    %c0_33 = arith.constant 0 : index
    %59 = vector.load %arg4[%c7, %c0_33] : memref<24x128xf32, #tpu.memory_space<vmem>>, vector<1x128xf32>
    %60 = arith.addf %59, %16 : vector<1x128xf32>
    %c7_34 = arith.constant 7 : index
    %c0_35 = arith.constant 0 : index
    %61 = vector.load %arg4[%c7_34, %c0_35] : memref<24x128xf32, #tpu.memory_space<vmem>>, vector<1x128xf32>
    tpu.vector_store %arg4[%c7_34, %c0_35], %60 {strides = array<i32>} : memref<24x128xf32, #tpu.memory_space<vmem>>, vector<1x128xf32>,
    %62 = vector.extract_strided_slice %13 {offsets = [0, 0], sizes = [2, 128], strides = [1, 1]} : vector<4x128xf32> to vector<2x128xf32>
    %c8_36 = arith.constant 8 : index
    %c0_37 = arith.constant 0 : index
    %63 = vector.load %arg4[%c8_36, %c0_37] : memref<24x128xf32, #tpu.memory_space<vmem>>, vector<2x128xf32>
    %cst_38 = arith.constant 0.000000e+00 : f32
    %64 = vector.broadcast %cst_38 : f32 to vector<2x128xf32>
    %65 = arith.cmpf olt, %62, %64 : vector<2x128xf32>
    %cst_39 = arith.constant 1.000000e+00 : f32
    %66 = vector.broadcast %cst_39 : f32 to vector<2x128xf32>
    %67 = arith.cmpf ogt, %62, %66 : vector<2x128xf32>
    %68 = arith.ori %65, %67 : vector<2x128xi1>
    %69 = arith.extui %68 : vector<2x128xi1> to vector<2x128xi32>
    %70 = arith.sitofp %69 : vector<2x128xi32> to vector<2x128xf32>
    %71 = arith.addf %63, %70 : vector<2x128xf32>
    %c8_40 = arith.constant 8 : index
    %c0_41 = arith.constant 0 : index
    %72 = vector.load %arg4[%c8_40, %c0_41] : memref<24x128xf32, #tpu.memory_space<vmem>>, vector<2x128xf32>
    tpu.vector_store %arg4[%c8_40, %c0_41], %71 {strides = array<i32>} : memref<24x128xf32, #tpu.memory_space<vmem>>, vector<2x128xf32>,
    %c16_42 = arith.constant 16 : index
    %c0_43 = arith.constant 0 : index
    %73 = vector.load %arg4[%c16_42, %c0_43] : memref<24x128xf32, #tpu.memory_space<vmem>>, vector<8x128xf32>
    %74 = vector.broadcast %15 : vector<1x128xf32> to vector<8x128xf32>
    %75 = arith.mulf %74, %40 : vector<8x128xf32>
    %76 = arith.addf %73, %75 : vector<8x128xf32>
    %c16_44 = arith.constant 16 : index
    %c0_45 = arith.constant 0 : index
    %77 = vector.load %arg4[%c16_44, %c0_45] : memref<24x128xf32, #tpu.memory_space<vmem>>, vector<8x128xf32>
    tpu.vector_store %arg4[%c16_44, %c0_45], %76 {strides = array<i32>} : memref<24x128xf32, #tpu.memory_space<vmem>>, vector<8x128xf32>,
    return
  }
  func.func @transform_0(%arg0: i32, %arg1: i32, %arg2: memref<16xi32, #tpu.memory_space<smem>>) -> (i32, i32) {
    %c8_i32 = arith.constant 8 : i32
    %0 = arith.muli %arg0, %c8_i32 : i32
    %1 = arith.addi %0, %arg1 : i32
    %c0_i32 = arith.constant 0 : i32
    %c0_i32_0 = arith.constant 0 : i32
    return %c0_i32, %1 : i32, i32
  }
  func.func @transform_1(%arg0: i32, %arg1: i32, %arg2: memref<16xi32, #tpu.memory_space<smem>>) -> (i32, i32) {
    %c8_i32 = arith.constant 8 : i32
    %0 = arith.muli %arg0, %c8_i32 : i32
    %1 = arith.addi %0, %arg1 : i32
    %2 = arith.index_cast %1 : i32 to index
    %3 = memref.load %arg2[%2] : memref<16xi32, #tpu.memory_space<smem>>
    %c0_i32 = arith.constant 0 : i32
    %c0_i32_0 = arith.constant 0 : i32
    return %3, %c0_i32 : i32, i32
  }
}

</mosaic_0001>

<llo_original>
// kernel: _yolo_v3_loss_fused.1
$region0: #{_yolo_v3_loss_fused.1}
  #allocation0 [shape = 'u32[]', space=smem, size = 0x4, offset = 0x4, fixed_abs, tag = 'smem constant byte address 0x4 - core index']
  #allocation1 [shape = 'u32[72,128]{1,0:T(1,128)}', space=vmem, size = 0x9000, scoped, tag = 'internal scratch']
  #allocation2 [shape = 's32[1]{0}', space=sflag, size = 0x4, scoped, tag = 'scoped memory for _yolo_v3_loss_fused.1']
  #allocation3 [shape = 'u8[512]{0}', space=smem, size = 0x200, scoped, tag = 'prefetched SMEM operand 0']
  %s0 = inlined_call_operand.vmem [shape: s32[16], index: 0, kind: input, shape index: {}]
  %s1 = inlined_call_operand.vmem [shape: f32[32,2048], index: 1, kind: input, shape index: {}]
  %s2 = inlined_call_operand.vmem [shape: f32[144,128], index: 2, kind: output, shape index: {}]
  %s3 = sld [smem:[#allocation0]]
  $region79: #{_yolo_v3_loss_fused.1} parent=0
    _
  %s5 = ssub.s32 1, %s3
  %s6 = scalar_select 0, %s5, %s3
  %s8 = sshll.u32 %s0, 4
  %s9 = int_to_ptr.vmem [resolvable:$true] %s8
  %11 = dma.vmem_to_smem %s9, 16, [#allocation3], [#allocation2]
  %13 = dma.done [#allocation2], 16
  %14 = sfence
  $region1: #{_yolo_v3_loss_fused.1} parent=0
    #allocation4 [shape = 'u8[32768]{0}', space=vmem, size = 0x8000, scoped, tag = 'input window, operand 1']
    loop: start=0, step=1, limit=18
    $region2: #{_yolo_v3_loss_fused.1} parent=1 // loop_pre_header
      _
    $region3: #{_yolo_v3_loss_fused.1} parent=1 // loop_header
      %s16 = sphi 0, %s20
      %p17 = scmp.ge.s32.totalorder %s16, 18
      %s23 = sphi 0, %s35
      %s24 = sphi 0, %s31
      %s25 = sphi 0, %s23
      %s26 = sphi 0, %s24
      %s27 = sphi 0, %s25
      %s28 = sphi 0, %s26
      %s42 = sphi 0, %s44
      %s45 = sphi 0, %s42
      %s46 = sphi 0, %s45
      %s62 = sphi 0, %s46
      %s74 = sphi 0, %s76
      %s77 = sphi 0, %s74
      %s78 = sphi 0, %s77
      %s94 = sphi 0, %s78
    $region4: #{_yolo_v3_loss_fused.1} parent=1 // loop_header_branch
      %19 = sbr.rel (%p17) target = $region8
    $region5: #{_yolo_v3_loss_fused.1} parent=1 // loop_body
      %s21 = ssub.s32 %s16, 1
      %s22 = ssub.s32 %s16, 2
      %s29 = sadd.s32 1, %s24
      %p30 = scmp.ge.s32.totalorder %s29, 8
      %s31 = scalar_select %p30, 0, %s29
      %s32 = sadd.s32 1, %s23
      %s33 = scalar_select %p30, %s32, %s23
      %p34 = scmp.ge.s32.totalorder %s33, 2
      %s35 = scalar_select %p34, 0, %s33
      %s36 = smul.u32 %s23, 8
      %s37 = sadd.s32 %s36, %s24
      %s38 = smul.u32 %s35, 8
      %s39 = sadd.s32 %s38, %s31
      %s40 = ssub.s32 %s37, %s39
      %p41 = scmp.eq.s32.totalorder %s40, 0
      %s43 = sadd.s32 %s42, 1
      %s44 = scalar_select %p41, %s42, %s43
      %p47 = pneg %p41
      %p48 = scmp.eq.s32.totalorder %s16, 15
      %p49 = por %p47, %p48
      %p50 = scmp.ne.s32.totalorder %s42, %s45
      %p51 = scmp.eq.s32.totalorder %s16, 0
      %p52 = por %p50, %p51
      %p53 = scmp.ne.s32.totalorder %s42, %s45
      %p54 = scmp.eq.s32.totalorder %s21, 15
      %p55 = por %p53, %p54
      %p56 = scmp.ne.s32.totalorder %s45, %s46
      %p57 = scmp.eq.s32.totalorder %s21, 0
      %p58 = por %p56, %p57
      %p59 = scmp.ne.s32.totalorder %s45, %s46
      %p60 = scmp.eq.s32.totalorder %s22, 15
      %p61 = por %p59, %p60
      %p63 = scmp.ne.s32.totalorder %s46, %s62
      %p64 = scmp.eq.s32.totalorder %s22, 0
      %p65 = por %p63, %p64
      %s66 = smul.u32 %s23, 8
      %s67 = sadd.s32 %s66, %s24
      %s68 = sld [smem:[#allocation3 + %s67]]
      %s69 = smul.u32 %s35, 8
      %s70 = sadd.s32 %s69, %s31
      %s71 = sld [smem:[#allocation3 + %s70]]
      %s72 = ssub.s32 %s68, %s71
      %p73 = scmp.eq.s32.totalorder %s72, 0
      %s75 = sadd.s32 %s74, 1
      %s76 = scalar_select %p73, %s74, %s75
      %p79 = pneg %p73
      %p80 = scmp.eq.s32.totalorder %s16, 15
      %p81 = por %p79, %p80
      %p82 = scmp.ne.s32.totalorder %s74, %s77
      %p83 = scmp.eq.s32.totalorder %s16, 0
      %p84 = por %p82, %p83
      %p85 = scmp.ne.s32.totalorder %s74, %s77
      %p86 = scmp.eq.s32.totalorder %s21, 15
      %p87 = por %p85, %p86
      %p88 = scmp.ne.s32.totalorder %s77, %s78
      %p89 = scmp.eq.s32.totalorder %s21, 0
      %p90 = por %p88, %p89
      %p91 = scmp.ne.s32.totalorder %s77, %s78
      %p92 = scmp.eq.s32.totalorder %s22, 15
      %p93 = por %p91, %p92
      %p95 = scmp.ne.s32.totalorder %s78, %s94
      %p96 = scmp.eq.s32.totalorder %s22, 0
      %p97 = por %p95, %p96
      %p98 = scmp.le.s32.totalorder 1, %s16
      %p99 = scmp.lt.s32.totalorder %s16, 17
      %p100 = pnand %p98, %p99
      %p101 = pneg %p100
      // Predicated region
      $region9: #{_yolo_v3_loss_fused.1} parent=5 // pred_check
        _
      $region10: #{_yolo_v3_loss_fused.1} parent=5 // pred_check_branch
        %103 = sbr.rel (%p100) target = $region12
      $region11: #{_yolo_v3_loss_fused.1} parent=5 // pred_region
        %s104 = ssub.s32 %s16, 1
      $region12: #{_yolo_v3_loss_fused.1} parent=5 // pred_fallthru
        _
      %p105 = scmp.lt.s32.totalorder %s16, 16
      // Predicated region
      $region13: #{_yolo_v3_loss_fused.1} parent=5 // pred_check
        %p106 = pneg %p105
      $region14: #{_yolo_v3_loss_fused.1} parent=5 // pred_check_branch
        %108 = sbr.rel (%p106) target = $region16
      $region15: #{_yolo_v3_loss_fused.1} parent=5 // pred_region
        // Predicated region
        $region17: #{_yolo_v3_loss_fused.1} parent=15 // pred_check
          %p109 = pneg %p52
        $region18: #{_yolo_v3_loss_fused.1} parent=15 // pred_check_branch
          %111 = sbr.rel (%p109) target = $region20
        $region19: #{_yolo_v3_loss_fused.1} parent=15 // pred_region
          %s112 = sand.u32 %s42, 1
          %s113 = sand.u32 %s42, 1
          %s114 = smul.addr %s113, 32
          %s115 = scalar_lea.vmem [#allocation4], %s114
          %s116 = smul.u32 %s23, 8
          %s117 = sadd.s32 %s116, %s24
          %s118 = smul.addr %s117, 8
          %s119 = scalar_lea.vmem %s1, %s118
          // Predicated region
          $region21: #{_yolo_v3_loss_fused.1} parent=19 // pred_check
            _
          $region22: #{_yolo_v3_loss_fused.1} parent=19 // pred_check_branch
            %121 = sbr.rel (0) target = $region24
          $region23: #{_yolo_v3_loss_fused.1} parent=19 // pred_region
            // Predicated region
            $region25: #{_yolo_v3_loss_fused.1} parent=23 // pred_check
              _
            $region26: #{_yolo_v3_loss_fused.1} parent=23 // pred_check_branch
              %123 = sbr.rel (0) target = $region28
            $region27: #{_yolo_v3_loss_fused.1} parent=23 // pred_region
              // Predicated region
              $region40: #{_yolo_v3_loss_fused.1} parent=27 // pred_check
                _
              $region41: #{_yolo_v3_loss_fused.1} parent=27 // pred_check_branch
                %145 = sbr.rel (0) target = $region43
              $region42: #{_yolo_v3_loss_fused.1} parent=27 // pred_region
                loop: start=0, step=1, limit=1
                $region44: #{_yolo_v3_loss_fused.1} parent=42 // loop_pre_header
                  _
                $region45: #{_yolo_v3_loss_fused.1} parent=42 // loop_header
                  %s147 = sphi 0, %s151
                  %p148 = scmp.ge.s32.totalorder %s147, 1
                  %s152 = sphi %s119, %s119
                  %s153 = sphi %s115, %s115
                $region46: #{_yolo_v3_loss_fused.1} parent=42 // loop_header_branch
                  %150 = sbr.rel (%p148) target = $region50
                $region47: #{_yolo_v3_loss_fused.1} parent=42 // loop_body
                  %v154 = vld [vmem:[%s152] sm:$0xff]
                  %155 = vst [vmem:[%s153] sm:$0xff] %v154
                  %v156 = vld [vmem:[%s152 + $0x80] sm:$0xff]
                  %157 = vst [vmem:[%s153 + $0x8] sm:$0xff] %v156
                  %v158 = vld [vmem:[%s152 + $0x100] sm:$0xff]
                  %159 = vst [vmem:[%s153 + $0x10] sm:$0xff] %v158
                  %v160 = vld [vmem:[%s152 + $0x180] sm:$0xff]
                  %161 = vst [vmem:[%s153 + $0x18] sm:$0xff] %v160
                $region48: #{_yolo_v3_loss_fused.1} parent=42 // loop_footer
                  %s151 = sadd.s32 1, %s147
                $region49: #{_yolo_v3_loss_fused.1} parent=42 // loop_footer_branch
                  %146 = sbr.rel target = $region45
                $region50: #{_yolo_v3_loss_fused.1} parent=42 // loop_exit
                  _
              $region43: #{_yolo_v3_loss_fused.1} parent=27 // pred_fallthru
                _
              // Predicated region
              $region51: #{_yolo_v3_loss_fused.1} parent=27 // pred_check
                _
              $region52: #{_yolo_v3_loss_fused.1} parent=27 // pred_check_branch
                %163 = sbr.rel target = $region54
              $region53: #{_yolo_v3_loss_fused.1} parent=27 // pred_region
                _
              $region54: #{_yolo_v3_loss_fused.1} parent=27 // pred_fallthru
                _
            $region28: #{_yolo_v3_loss_fused.1} parent=23 // pred_fallthru
              _
            // Predicated region
            $region29: #{_yolo_v3_loss_fused.1} parent=23 // pred_check
              _
            $region30: #{_yolo_v3_loss_fused.1} parent=23 // pred_check_branch
              %125 = sbr.rel target = $region32
            $region31: #{_yolo_v3_loss_fused.1} parent=23 // pred_region
              %s127 = ssub.s32 256, 1
              loop: start=0, step=1, limit=1
              $region33: #{_yolo_v3_loss_fused.1} parent=31 // loop_pre_header
                _
              $region34: #{_yolo_v3_loss_fused.1} parent=31 // loop_header
                %s129 = sphi 0, %s133
                %p130 = scmp.ge.s32.totalorder %s129, 1
                %s134 = sphi %s119, %s119
                %s135 = sphi %s115, %s115
              $region35: #{_yolo_v3_loss_fused.1} parent=31 // loop_header_branch
                %132 = sbr.rel (%p130) target = $region39
              $region36: #{_yolo_v3_loss_fused.1} parent=31 // loop_body
                %v136 = vld [vmem:[%s134] sm:%s127]
                %137 = vst [vmem:[%s135] sm:%s127] %v136
                %v138 = vld [vmem:[%s134 + $0x80] sm:%s127]
                %139 = vst [vmem:[%s135 + $0x8] sm:%s127] %v138
                %v140 = vld [vmem:[%s134 + $0x100] sm:%s127]
                %141 = vst [vmem:[%s135 + $0x10] sm:%s127] %v140
                %v142 = vld [vmem:[%s134 + $0x180] sm:%s127]
                %143 = vst [vmem:[%s135 + $0x18] sm:%s127] %v142
              $region37: #{_yolo_v3_loss_fused.1} parent=31 // loop_footer
                %s133 = sadd.s32 1, %s129
              $region38: #{_yolo_v3_loss_fused.1} parent=31 // loop_footer_branch
                %128 = sbr.rel target = $region34
              $region39: #{_yolo_v3_loss_fused.1} parent=31 // loop_exit
                _
            $region32: #{_yolo_v3_loss_fused.1} parent=23 // pred_fallthru
              _
          $region24: #{_yolo_v3_loss_fused.1} parent=19 // pred_fallthru
            _
          %164 = vnop
        $region20: #{_yolo_v3_loss_fused.1} parent=15 // pred_fallthru
          _
      $region16: #{_yolo_v3_loss_fused.1} parent=5 // pred_fallthru
        _
      %p165 = scmp.le.s32.totalorder 1, %s16
      %p166 = scmp.lt.s32.totalorder %s16, 17
      %p167 = pnand %p165, %p166
      %p168 = pneg %p167
      // Predicated region
      $region55: #{_yolo_v3_loss_fused.1} parent=5 // pred_check
        _
      $region56: #{_yolo_v3_loss_fused.1} parent=5 // pred_check_branch
        %170 = sbr.rel (%p167) target = $region58
      $region57: #{_yolo_v3_loss_fused.1} parent=5 // pred_region
        %s171 = ssub.s32 %s16, 1
        %s172 = sand.u32 %s45, 1
        %s173 = sand.u32 %s45, 1
        %s174 = smul.addr %s173, 32
        %s175 = scalar_lea.vmem [#allocation4], %s174
        // Predicated region
        $region59: #{_yolo_v3_loss_fused.1} parent=57 // pred_check
          %p176 = pneg %p58
        $region60: #{_yolo_v3_loss_fused.1} parent=57 // pred_check_branch
          %178 = sbr.rel (%p176) target = $region62
        $region61: #{_yolo_v3_loss_fused.1} parent=57 // pred_region
          _
        $region62: #{_yolo_v3_loss_fused.1} parent=57 // pred_fallthru
          _
        %s179 = sand.u32 %s45, 1
        %s180 = sand.u32 %s45, 1
        %s181 = smul.addr %s180, 32
        %s182 = scalar_lea.vmem [#allocation4], %s181
        %p183 = pneg %p58
        %p184 = pneg %p55
        %p185 = pneg %p90
        %p186 = pneg %p87
        %s187 = smul.u32 %s25, 8
        %s188 = sadd.s32 %s187, %s26
        %s189 = sld [smem:[#allocation3 + %s188]]
        %s190 = smul.u32 3, %s189
        %p191 = scmp.lt.s32.totalorder %s190, 17
        %s192 = scalar_select %p191, %s190, 17
        %s193 = smul.addr %s192, 8
        %s194 = scalar_lea.vmem %s2, %s193
        %s195 = smul.u32 %s25, 8
        %s196 = sadd.s32 %s195, %s26
        %s197 = smul.u32 %s25, 8
        %s198 = sadd.s32 %s197, %s26
        %s199 = sld [smem:[#allocation3 + %s198]]
        %s200 = smul.u32 3, %s199
        %p201 = scmp.lt.s32.totalorder %s200, 17
        %s202 = scalar_select %p201, %s200, 17
        %s203 = smul.addr %s202, 8
        %s204 = scalar_lea.vmem %s2, %s203
        %s205 = smul.u32 %s25, 8
        %s206 = sadd.s32 %s205, %s26
        %s207 = sld [smem:[#allocation3 + %s206]]
        %s208 = smul.u32 3, %s207
        %s209 = smul.u32 %s25, 8
        %s210 = sadd.s32 %s209, %s26
        %s211 = ssub.s32 %s210, 1
        %p212 = scmp.gt.s32.totalorder %s211, 0
        %s213 = scalar_select %p212, %s211, 0
        %p214 = scmp.eq.s32.totalorder %s26, 0
        %s215 = sld [smem:[#allocation3 + %s210]]
        %s216 = sld [smem:[#allocation3 + %s213]]
        %p217 = scmp.ne.s32.totalorder %s215, %s216
        %p218 = por %p214, %p217
        // Predicated region
        $region63: #{_yolo_v3_loss_fused.1} parent=57 // pred_check
          %p219 = pneg %p218
        $region64: #{_yolo_v3_loss_fused.1} parent=57 // pred_check_branch
          %221 = sbr.rel (%p219) target = $region66
        $region65: #{_yolo_v3_loss_fused.1} parent=57 // pred_region
          %222 = vst [vmem:[%s204] sm:$0xff] 0.0
          %223 = vst [vmem:[%s204 + $0x8] sm:$0xff] 0.0
          %224 = vst [vmem:[%s204 + $0x10] sm:$0xff] 0.0
        $region66: #{_yolo_v3_loss_fused.1} parent=57 // pred_fallthru
          _
        %v225 = vld [vmem:[%s175] sm:$0xf]
        %v226 = vld [vmem:[%s175 + $0x4] sm:$0x1]
        %v227 = vld [vmem:[%s175 + $0x5] sm:$0x1]
        %v228 = vld [vmem:[%s175 + $0x6] sm:$0x1]
        %v229 = vld [vmem:[%s175 + $0x8] sm:$0xf]
        %v230 = vld [vmem:[%s175 + $0xc] sm:$0x1]
        %v231 = vld [vmem:[%s175 + $0x10] sm:$0xff]
        %v232 = vld [vmem:[%s175 + $0x18] sm:$0xff]
        %vm233 = vcmp.gt.f32.partialorder %v230, 0.5
        %v234 = vsub.f32 1.0, %v226
        %v235 = vsel %vm233, %v226, %v234
        %v236 = vlog2.pop %v235
        %v237 = vmul.f32 %v236, 0.6931472
        %v238 = vmax.f32 %v237, -100.0
        %v239 = vsub.f32 0.0, %v238
        %vm240 = vcmp.gt.f32.partialorder %v232, 0.5
        %v241 = vsub.f32 1.0, %v231
        %v242 = vsel %vm240, %v231, %v241
        %v243 = vlog2.pop %v242
        %v244 = vmul.f32 %v243, 0.6931472
        %v245 = vmax.f32 %v244, -100.0
        %v246 = vsub.f32 0.0, %v245
        %v247 = vld [vmem:[%s204] sm:$0xf]
        %v248 = vsub.f32 %v225, %v229
        %v249 = vmul.f32 %v248, %v248
        %v250 = vperm.slane %v227, 0
        %v251 = vmul.f32 %v250, %v249
        %v252 = vadd.f32 %v247, %v251
        %253 = vst [vmem:[%s204] sm:$0xf] %v252
        %v254 = vld [vmem:[%s204 + $0x4] sm:$0x1]
        %v255 = vmul.f32 %v227, %v239
        %v256 = vadd.f32 %v254, %v255
        %257 = vst [vmem:[%s204 + $0x4] sm:$0x1] %v256
        %v258 = vld [vmem:[%s204 + $0x5] sm:$0x1]
        %v259 = vmul.f32 %v228, %v239
        %v260 = vadd.f32 %v258, %v259
        %261 = vst [vmem:[%s204 + $0x5] sm:$0x1] %v260
        %v262 = vld [vmem:[%s204 + $0x6] sm:$0x1]
        %v263 = vadd.f32 %v262, %v227
        %264 = vst [vmem:[%s204 + $0x6] sm:$0x1] %v263
        %v265 = vld [vmem:[%s204 + $0x7] sm:$0x1]
        %v266 = vadd.f32 %v265, %v228
        %267 = vst [vmem:[%s204 + $0x7] sm:$0x1] %v266
        %v268 = vld [vmem:[%s204 + $0x8] sm:$0x3]
        %vm269 = vcmp.lt.f32.partialorder %v225, 0.0
        %vm270 = vcmp.gt.f32.partialorder %v225, 1.0
        %vm271 = vmor %vm269, %vm270
        %v272 = vsel %vm271, 1, 0
        %v273 = vcvt.s32.f32 %v272
        %v274 = vadd.f32 %v268, %v273
        %275 = vst [vmem:[%s204 + $0x8] sm:$0x3] %v274
        %v276 = vld [vmem:[%s204 + $0x10] sm:$0xff]
        %v277 = vmul.f32 %v250, %v246
        %v278 = vadd.f32 %v276, %v277
        %279 = vst [vmem:[%s204 + $0x10] sm:$0xff] %v278
        %s280 = smul.u32 %s25, 8
        %s281 = sadd.s32 %s280, %s26
        %s282 = sld [smem:[#allocation3 + %s281]]
        %s283 = smul.u32 3, %s282
        %p284 = scmp.lt.s32.totalorder %s283, 17
        %s285 = scalar_select %p284, %s283, 17
        %s286 = smul.addr %s285, 8
        %s287 = scalar_lea.vmem %s2, %s286
        // Predicated region
        $region67: #{_yolo_v3_loss_fused.1} parent=57 // pred_check
          %p288 = pneg %p87
        $region68: #{_yolo_v3_loss_fused.1} parent=57 // pred_check_branch
          %290 = sbr.rel (%p288) target = $region70
        $region69: #{_yolo_v3_loss_fused.1} parent=57 // pred_region
          %s291 = smul.u32 %s25, 8
          %s292 = sadd.s32 %s291, %s26
          %s293 = sld [smem:[#allocation3 + %s292]]
          %s294 = smul.u32 3, %s293
        $region70: #{_yolo_v3_loss_fused.1} parent=57 // pred_fallthru
          _
      $region58: #{_yolo_v3_loss_fused.1} parent=5 // pred_fallthru
        _
      %p295 = scmp.le.s32.totalorder 2, %s16
      // Predicated region
      $region71: #{_yolo_v3_loss_fused.1} parent=5 // pred_check
        %p296 = pneg %p295
      $region72: #{_yolo_v3_loss_fused.1} parent=5 // pred_check_branch
        %298 = sbr.rel (%p296) target = $region74
      $region73: #{_yolo_v3_loss_fused.1} parent=5 // pred_region
        %s299 = ssub.s32 %s16, 2
        // Predicated region
        $region75: #{_yolo_v3_loss_fused.1} parent=73 // pred_check
          %p300 = pneg %p93
        $region76: #{_yolo_v3_loss_fused.1} parent=73 // pred_check_branch
          %302 = sbr.rel (%p300) target = $region78
        $region77: #{_yolo_v3_loss_fused.1} parent=73 // pred_region
          %s303 = smul.u32 %s27, 8
          %s304 = sadd.s32 %s303, %s28
          %s305 = sld [smem:[#allocation3 + %s304]]
          %s306 = smul.u32 3, %s305
          %p307 = scmp.lt.s32.totalorder %s306, 17
          %s308 = scalar_select %p307, %s306, 17
          %s309 = smul.addr %s308, 8
          %s310 = scalar_lea.vmem %s2, %s309
        $region78: #{_yolo_v3_loss_fused.1} parent=73 // pred_fallthru
          _
      $region74: #{_yolo_v3_loss_fused.1} parent=5 // pred_fallthru
        _
    $region6: #{_yolo_v3_loss_fused.1} parent=1 // loop_footer
      %s20 = sadd.s32 1, %s16
    $region7: #{_yolo_v3_loss_fused.1} parent=1 // loop_footer_branch
      %15 = sbr.rel target = $region3
    $region8: #{_yolo_v3_loss_fused.1} parent=1 // loop_exit
      _

</llo_original>
